<compile_context>
chip_gen: v7x
topology: tpu7x:2x2x1
jax: 0.10.0
libtpu: 0.0.40
codegen_flags: <defaults>
</compile_context>

<pallas_src>
import functools

import jax
import jax.numpy as jnp
from jax import lax
from jax.experimental import pallas as pl
from jax.experimental.pallas import tpu as pltpu

D_IN, D_HID, D_OUT = 2, 8, 2
LANES = 128            # lane width of the flattened (R, 128) view
PAT_ROWS = 40          # 33 rows used, padded to a multiple of 8

# pattern-table row offsets
_A0, _B0, _P0, _Q, _C0 = 0, 8, 16, 24, 25


def _round_up(n, m):
    return ((n + m - 1) // m) * m


def _mlp_kernel(x_ref, pat_ref, o_ref):
    """x_ref / o_ref: (SB, 128) rows of the interleaved flat stream
    [b0f0, b0f1, b1f0, b1f1, ...] (pairs never cross a row boundary).

    pat_ref: (40, 128) lane-parity weight table (VMEM resident):
      rows  0..7  : A_j = even? w1[j,0] : w1[j,1]
      rows  8..15 : B_j = even? w1[j,1] : w1[j,0]
      rows 16..23 : P_j = even? w2[0,j] : w2[1,j]
      row  24     : Q   = even? b2[0]   : b2[1]
      rows 25..32 : C_j = b1[j]
    """
    z = x_ref[...]                                            # (SB, 128)

    lane = lax.broadcasted_iota(jnp.int32, (1, LANES), 1)
    even = (lane & 1) == 0                                    # (1, 128)

    # pair swap: zsw[l] = z[l ^ 1]  (the partner feature of the same element)
    zsw = jnp.where(even,
                    pltpu.roll(z, LANES - 1, 1),              # z[l+1] at even l
                    pltpu.roll(z, 1, 1))                      # z[l-1] at odd l

    acc = pat_ref[_Q:_Q + 1, :]                               # fc2 bias pattern
    for j in range(D_HID):
        a_j = pat_ref[_A0 + j:_A0 + j + 1, :]
        b_j = pat_ref[_B0 + j:_B0 + j + 1, :]
        c_j = pat_ref[_C0 + j:_C0 + j + 1, :]
        p_j = pat_ref[_P0 + j:_P0 + j + 1, :]
        # pre-activation = w1[j,0]*x0 + w1[j,1]*x1 + b1[j] at every lane
        h_j = jnp.maximum(a_j * z + b_j * zsw + c_j, 0.0)     # (SB, 128)
        acc = acc + p_j * h_j                                 # += w2[f,j]*h_j

    o_ref[...] = acc.astype(o_ref.dtype)


def _make_patterns(w1, b1, w2, b2):
    """Fold torch-layout weights into lane-parity pattern rows (tiny)."""
    even = (jnp.arange(LANES) % 2) == 0

    def pat(a, b):
        return jnp.where(even, a, b)

    rows = []
    for j in range(D_HID):
        rows.append(pat(w1[j, 0], w1[j, 1]))       # A_j
    for j in range(D_HID):
        rows.append(pat(w1[j, 1], w1[j, 0]))       # B_j
    for j in range(D_HID):
        rows.append(pat(w2[0, j], w2[1, j]))       # P_j
    rows.append(pat(b2[0], b2[1]))                 # Q
    for j in range(D_HID):
        rows.append(jnp.full((LANES,), b1[j]))     # C_j
    table = jnp.stack(rows).astype(jnp.float32)    # (33, 128)
    return jnp.pad(table, ((0, PAT_ROWS - table.shape[0]), (0, 0)))


@functools.partial(jax.jit, static_argnames=("block_rows",))
def simple_network(x, w1, b1, w2, b2, *, block_rows=2048):
    """Forward pass of SimpleNetwork: fc2(relu(fc1(x))).

    x: (B, 2).  w1: (8, 2), b1: (8,), w2: (2, 8), b2: (2,)  (torch layouts).
    Returns (B, 2) with x's dtype; compute is f32.
    """
    B = x.shape[0]
    n = 2 * B
    n_pad = _round_up(n, LANES)

    flat = x.reshape(-1).astype(jnp.float32)       # free (row-major)
    if n_pad != n:                                 # only when 2B % 128 != 0
        flat = jnp.pad(flat, (0, n_pad - n))
    xv = flat.reshape(n_pad // LANES, LANES)       # free reshape
    R = xv.shape[0]

    pat = _make_patterns(w1.astype(jnp.float32), b1.astype(jnp.float32),
                         w2.astype(jnp.float32), b2.astype(jnp.float32))

    block_rows = max(8, _round_up(block_rows, 8))
    if R <= block_rows:
        sb = R                                     # single full-extent block
    else:
        # aim for ~8 tiles (2-TC sharding + deep pipeline), blocks >= 256 rows
        sb = min(block_rows, max(256, _round_up(pl.cdiv(R, 8), 8)))
    grid = (pl.cdiv(R, sb),)

    flops = 2 * B * (D_IN * D_HID + D_HID * D_OUT)
    bytes_accessed = 4 * (n_pad + n_pad + PAT_ROWS * LANES)

    out = pl.pallas_call(
        _mlp_kernel,
        out_shape=jax.ShapeDtypeStruct((R, LANES), jnp.float32),
        grid=grid,
        in_specs=[
            pl.BlockSpec((sb, LANES), lambda i: (i, 0)),        # x rows
            pl.BlockSpec((PAT_ROWS, LANES), lambda i: (0, 0)),  # weight table
        ],
        out_specs=pl.BlockSpec((sb, LANES), lambda i: (i, 0)),
        compiler_params=pltpu.CompilerParams(
            dimension_semantics=("parallel",)),
        cost_estimate=pl.CostEstimate(
            flops=flops, transcendentals=0, bytes_accessed=bytes_accessed),
    )(xv, pat)

    out_flat = out.reshape(-1)                     # free
    if n_pad != n:
        out_flat = out_flat[:n]
    return out_flat.reshape(B, D_OUT).astype(x.dtype)


def _ref_forward(x, w1, b1, w2, b2):
    h = jnp.maximum(x @ w1.T + b1, 0.0)
    return h @ w2.T + b2


if __name__ == "__main__":
    key = jax.random.PRNGKey(0)
    kx, kx2, kx3, k1, k2, k3, k4 = jax.random.split(key, 7)

    # PyTorch nn.Linear default init: U(-1/sqrt(fan_in), 1/sqrt(fan_in)).
    bound1 = 1.0 / jnp.sqrt(D_IN)
    bound2 = 1.0 / jnp.sqrt(D_HID)
    w1 = jax.random.uniform(k1, (D_HID, D_IN), jnp.float32, -bound1, bound1)
    b1 = jax.random.uniform(k2, (D_HID,), jnp.float32, -bound1, bound1)
    w2 = jax.random.uniform(k3, (D_OUT, D_HID), jnp.float32, -bound2, bound2)
    b2 = jax.random.uniform(k4, (D_OUT,), jnp.float32, -bound2, bound2)

    # Small batch matching the module (batch=8, in_features=2).
    B = 8
    x = jax.random.normal(kx, (B, D_IN), jnp.float32)
    out = jax.block_until_ready(simple_network(x, w1, b1, w2, b2))
    ref = _ref_forward(x, w1, b1, w2, b2)
    assert out.shape == (B, D_OUT)
    assert jnp.allclose(out, ref, atol=1e-5, rtol=1e-5)

    # Ragged batch (2B not a multiple of 128): exercises the pad fallback.
    B2 = 300
    x2 = jax.random.normal(kx2, (B2, D_IN), jnp.float32)
    out2 = jax.block_until_ready(simple_network(x2, w1, b1, w2, b2))
    assert jnp.allclose(out2, _ref_forward(x2, w1, b1, w2, b2),
                        atol=1e-5, rtol=1e-5)

    # Aligned batch with a multi-tile grid and a partial last block
    # (block_rows forced small so the pipelined grid path is exercised).
    B3 = 4096
    x3 = jax.random.normal(kx3, (B3, D_IN), jnp.float32)
    out3 = jax.block_until_ready(
        simple_network(x3, w1, b1, w2, b2, block_rows=24))
    assert jnp.allclose(out3, _ref_forward(x3, w1, b1, w2, b2),
                        atol=1e-5, rtol=1e-5)

    print("KERNEL_OK")
</pallas_src>

<mosaic_0001>
module attributes {stable_mosaic.version = 11 : i64} {
  func.func @_mlp_kernel(%arg0: i32, %arg1: memref<1x128xf32, #tpu.memory_space<vmem>>, %arg2: memref<40x128xf32, #tpu.memory_space<vmem>>, %arg3: memref<1x128xf32, #tpu.memory_space<vmem>>) attributes {dimension_semantics = [#tpu.dimension_semantics<parallel>], iteration_bounds = array<i64: 1>, scalar_prefetch = 0 : i64, scratch_operands = 0 : i64, tpu.core_type = #tpu.core_type<tc>, window_params = [{transform_indices = @transform_0, window_bounds = array<i64: 1, 128>}, {pipeline_mode = #tpu.pipeline_mode<synchronous>, transform_indices = @transform_1, window_bounds = array<i64: 40, 128>}, {transform_indices = @transform_2, window_bounds = array<i64: 1, 128>}]} {
    %c0 = arith.constant 0 : index
    %c0_0 = arith.constant 0 : index
    %0 = vector.load %arg1[%c0, %c0_0] : memref<1x128xf32, #tpu.memory_space<vmem>>, vector<1x128xf32>
    %1 = tpu.iota {dimensions = array<i32: 1>} : vector<1x128xi32>
    %c1_i32 = arith.constant 1 : i32
    %2 = vector.broadcast %c1_i32 : i32 to vector<1x128xi32>
    %3 = arith.andi %1, %2 : vector<1x128xi32>
    %c0_i32 = arith.constant 0 : i32
    %4 = vector.broadcast %c0_i32 : i32 to vector<1x128xi32>
    %5 = arith.cmpi eq, %3, %4 : vector<1x128xi32>
    %c127_i32 = arith.constant 127 : i32
    %6 = tpu.dynamic_rotate %0 by %c127_i32 dim 1 : vector<1x128xf32>, i32 -> vector<1x128xf32>
    %c1_i32_1 = arith.constant 1 : i32
    %7 = tpu.dynamic_rotate %0 by %c1_i32_1 dim 1 : vector<1x128xf32>, i32 -> vector<1x128xf32>
    %8 = arith.select %5, %6, %7 : vector<1x128xi1>, vector<1x128xf32>
    %c24 = arith.constant 24 : index
    %c0_2 = arith.constant 0 : index
    %9 = vector.load %arg2[%c24, %c0_2] : memref<40x128xf32, #tpu.memory_space<vmem>>, vector<1x128xf32>
    %c0_3 = arith.constant 0 : index
    %c0_4 = arith.constant 0 : index
    %10 = vector.load %arg2[%c0_3, %c0_4] : memref<40x128xf32, #tpu.memory_space<vmem>>, vector<1x128xf32>
    %c8 = arith.constant 8 : index
    %c0_5 = arith.constant 0 : index
    %11 = vector.load %arg2[%c8, %c0_5] : memref<40x128xf32, #tpu.memory_space<vmem>>, vector<1x128xf32>
    %c25 = arith.constant 25 : index
    %c0_6 = arith.constant 0 : index
    %12 = vector.load %arg2[%c25, %c0_6] : memref<40x128xf32, #tpu.memory_space<vmem>>, vector<1x128xf32>
    %c16 = arith.constant 16 : index
    %c0_7 = arith.constant 0 : index
    %13 = vector.load %arg2[%c16, %c0_7] : memref<40x128xf32, #tpu.memory_space<vmem>>, vector<1x128xf32>
    %14 = arith.mulf %10, %0 : vector<1x128xf32>
    %15 = arith.mulf %11, %8 : vector<1x128xf32>
    %16 = arith.addf %14, %15 : vector<1x128xf32>
    %17 = arith.addf %16, %12 : vector<1x128xf32>
    %cst = arith.constant 0.000000e+00 : f32
    %18 = vector.broadcast %cst : f32 to vector<1x128xf32>
    %19 = arith.maximumf %17, %18 : vector<1x128xf32>
    %20 = arith.mulf %13, %19 : vector<1x128xf32>
    %21 = arith.addf %9, %20 : vector<1x128xf32>
    %c1 = arith.constant 1 : index
    %c0_8 = arith.constant 0 : index
    %22 = vector.load %arg2[%c1, %c0_8] : memref<40x128xf32, #tpu.memory_space<vmem>>, vector<1x128xf32>
    %c9 = arith.constant 9 : index
    %c0_9 = arith.constant 0 : index
    %23 = vector.load %arg2[%c9, %c0_9] : memref<40x128xf32, #tpu.memory_space<vmem>>, vector<1x128xf32>
    %c26 = arith.constant 26 : index
    %c0_10 = arith.constant 0 : index
    %24 = vector.load %arg2[%c26, %c0_10] : memref<40x128xf32, #tpu.memory_space<vmem>>, vector<1x128xf32>
    %c17 = arith.constant 17 : index
    %c0_11 = arith.constant 0 : index
    %25 = vector.load %arg2[%c17, %c0_11] : memref<40x128xf32, #tpu.memory_space<vmem>>, vector<1x128xf32>
    %26 = arith.mulf %22, %0 : vector<1x128xf32>
    %27 = arith.mulf %23, %8 : vector<1x128xf32>
    %28 = arith.addf %26, %27 : vector<1x128xf32>
    %29 = arith.addf %28, %24 : vector<1x128xf32>
    %cst_12 = arith.constant 0.000000e+00 : f32
    %30 = vector.broadcast %cst_12 : f32 to vector<1x128xf32>
    %31 = arith.maximumf %29, %30 : vector<1x128xf32>
    %32 = arith.mulf %25, %31 : vector<1x128xf32>
    %33 = arith.addf %21, %32 : vector<1x128xf32>
    %c2 = arith.constant 2 : index
    %c0_13 = arith.constant 0 : index
    %34 = vector.load %arg2[%c2, %c0_13] : memref<40x128xf32, #tpu.memory_space<vmem>>, vector<1x128xf32>
    %c10 = arith.constant 10 : index
    %c0_14 = arith.constant 0 : index
    %35 = vector.load %arg2[%c10, %c0_14] : memref<40x128xf32, #tpu.memory_space<vmem>>, vector<1x128xf32>
    %c27 = arith.constant 27 : index
    %c0_15 = arith.constant 0 : index
    %36 = vector.load %arg2[%c27, %c0_15] : memref<40x128xf32, #tpu.memory_space<vmem>>, vector<1x128xf32>
    %c18 = arith.constant 18 : index
    %c0_16 = arith.constant 0 : index
    %37 = vector.load %arg2[%c18, %c0_16] : memref<40x128xf32, #tpu.memory_space<vmem>>, vector<1x128xf32>
    %38 = arith.mulf %34, %0 : vector<1x128xf32>
    %39 = arith.mulf %35, %8 : vector<1x128xf32>
    %40 = arith.addf %38, %39 : vector<1x128xf32>
    %41 = arith.addf %40, %36 : vector<1x128xf32>
    %cst_17 = arith.constant 0.000000e+00 : f32
    %42 = vector.broadcast %cst_17 : f32 to vector<1x128xf32>
    %43 = arith.maximumf %41, %42 : vector<1x128xf32>
    %44 = arith.mulf %37, %43 : vector<1x128xf32>
    %45 = arith.addf %33, %44 : vector<1x128xf32>
    %c3 = arith.constant 3 : index
    %c0_18 = arith.constant 0 : index
    %46 = vector.load %arg2[%c3, %c0_18] : memref<40x128xf32, #tpu.memory_space<vmem>>, vector<1x128xf32>
    %c11 = arith.constant 11 : index
    %c0_19 = arith.constant 0 : index
    %47 = vector.load %arg2[%c11, %c0_19] : memref<40x128xf32, #tpu.memory_space<vmem>>, vector<1x128xf32>
    %c28 = arith.constant 28 : index
    %c0_20 = arith.constant 0 : index
    %48 = vector.load %arg2[%c28, %c0_20] : memref<40x128xf32, #tpu.memory_space<vmem>>, vector<1x128xf32>
    %c19 = arith.constant 19 : index
    %c0_21 = arith.constant 0 : index
    %49 = vector.load %arg2[%c19, %c0_21] : memref<40x128xf32, #tpu.memory_space<vmem>>, vector<1x128xf32>
    %50 = arith.mulf %46, %0 : vector<1x128xf32>
    %51 = arith.mulf %47, %8 : vector<1x128xf32>
    %52 = arith.addf %50, %51 : vector<1x128xf32>
    %53 = arith.addf %52, %48 : vector<1x128xf32>
    %cst_22 = arith.constant 0.000000e+00 : f32
    %54 = vector.broadcast %cst_22 : f32 to vector<1x128xf32>
    %55 = arith.maximumf %53, %54 : vector<1x128xf32>
    %56 = arith.mulf %49, %55 : vector<1x128xf32>
    %57 = arith.addf %45, %56 : vector<1x128xf32>
    %c4 = arith.constant 4 : index
    %c0_23 = arith.constant 0 : index
    %58 = vector.load %arg2[%c4, %c0_23] : memref<40x128xf32, #tpu.memory_space<vmem>>, vector<1x128xf32>
    %c12 = arith.constant 12 : index
    %c0_24 = arith.constant 0 : index
    %59 = vector.load %arg2[%c12, %c0_24] : memref<40x128xf32, #tpu.memory_space<vmem>>, vector<1x128xf32>
    %c29 = arith.constant 29 : index
    %c0_25 = arith.constant 0 : index
    %60 = vector.load %arg2[%c29, %c0_25] : memref<40x128xf32, #tpu.memory_space<vmem>>, vector<1x128xf32>
    %c20 = arith.constant 20 : index
    %c0_26 = arith.constant 0 : index
    %61 = vector.load %arg2[%c20, %c0_26] : memref<40x128xf32, #tpu.memory_space<vmem>>, vector<1x128xf32>
    %62 = arith.mulf %58, %0 : vector<1x128xf32>
    %63 = arith.mulf %59, %8 : vector<1x128xf32>
    %64 = arith.addf %62, %63 : vector<1x128xf32>
    %65 = arith.addf %64, %60 : vector<1x128xf32>
    %cst_27 = arith.constant 0.000000e+00 : f32
    %66 = vector.broadcast %cst_27 : f32 to vector<1x128xf32>
    %67 = arith.maximumf %65, %66 : vector<1x128xf32>
    %68 = arith.mulf %61, %67 : vector<1x128xf32>
    %69 = arith.addf %57, %68 : vector<1x128xf32>
    %c5 = arith.constant 5 : index
    %c0_28 = arith.constant 0 : index
    %70 = vector.load %arg2[%c5, %c0_28] : memref<40x128xf32, #tpu.memory_space<vmem>>, vector<1x128xf32>
    %c13 = arith.constant 13 : index
    %c0_29 = arith.constant 0 : index
    %71 = vector.load %arg2[%c13, %c0_29] : memref<40x128xf32, #tpu.memory_space<vmem>>, vector<1x128xf32>
    %c30 = arith.constant 30 : index
    %c0_30 = arith.constant 0 : index
    %72 = vector.load %arg2[%c30, %c0_30] : memref<40x128xf32, #tpu.memory_space<vmem>>, vector<1x128xf32>
    %c21 = arith.constant 21 : index
    %c0_31 = arith.constant 0 : index
    %73 = vector.load %arg2[%c21, %c0_31] : memref<40x128xf32, #tpu.memory_space<vmem>>, vector<1x128xf32>
    %74 = arith.mulf %70, %0 : vector<1x128xf32>
    %75 = arith.mulf %71, %8 : vector<1x128xf32>
    %76 = arith.addf %74, %75 : vector<1x128xf32>
    %77 = arith.addf %76, %72 : vector<1x128xf32>
    %cst_32 = arith.constant 0.000000e+00 : f32
    %78 = vector.broadcast %cst_32 : f32 to vector<1x128xf32>
    %79 = arith.maximumf %77, %78 : vector<1x128xf32>
    %80 = arith.mulf %73, %79 : vector<1x128xf32>
    %81 = arith.addf %69, %80 : vector<1x128xf32>
    %c6 = arith.constant 6 : index
    %c0_33 = arith.constant 0 : index
    %82 = vector.load %arg2[%c6, %c0_33] : memref<40x128xf32, #tpu.memory_space<vmem>>, vector<1x128xf32>
    %c14 = arith.constant 14 : index
    %c0_34 = arith.constant 0 : index
    %83 = vector.load %arg2[%c14, %c0_34] : memref<40x128xf32, #tpu.memory_space<vmem>>, vector<1x128xf32>
    %c31 = arith.constant 31 : index
    %c0_35 = arith.constant 0 : index
    %84 = vector.load %arg2[%c31, %c0_35] : memref<40x128xf32, #tpu.memory_space<vmem>>, vector<1x128xf32>
    %c22 = arith.constant 22 : index
    %c0_36 = arith.constant 0 : index
    %85 = vector.load %arg2[%c22, %c0_36] : memref<40x128xf32, #tpu.memory_space<vmem>>, vector<1x128xf32>
    %86 = arith.mulf %82, %0 : vector<1x128xf32>
    %87 = arith.mulf %83, %8 : vector<1x128xf32>
    %88 = arith.addf %86, %87 : vector<1x128xf32>
    %89 = arith.addf %88, %84 : vector<1x128xf32>
    %cst_37 = arith.constant 0.000000e+00 : f32
    %90 = vector.broadcast %cst_37 : f32 to vector<1x128xf32>
    %91 = arith.maximumf %89, %90 : vector<1x128xf32>
    %92 = arith.mulf %85, %91 : vector<1x128xf32>
    %93 = arith.addf %81, %92 : vector<1x128xf32>
    %c7 = arith.constant 7 : index
    %c0_38 = arith.constant 0 : index
    %94 = vector.load %arg2[%c7, %c0_38] : memref<40x128xf32, #tpu.memory_space<vmem>>, vector<1x128xf32>
    %c15 = arith.constant 15 : index
    %c0_39 = arith.constant 0 : index
    %95 = vector.load %arg2[%c15, %c0_39] : memref<40x128xf32, #tpu.memory_space<vmem>>, vector<1x128xf32>
    %c32 = arith.constant 32 : index
    %c0_40 = arith.constant 0 : index
    %96 = vector.load %arg2[%c32, %c0_40] : memref<40x128xf32, #tpu.memory_space<vmem>>, vector<1x128xf32>
    %c23 = arith.constant 23 : index
    %c0_41 = arith.constant 0 : index
    %97 = vector.load %arg2[%c23, %c0_41] : memref<40x128xf32, #tpu.memory_space<vmem>>, vector<1x128xf32>
    %98 = arith.mulf %94, %0 : vector<1x128xf32>
    %99 = arith.mulf %95, %8 : vector<1x128xf32>
    %100 = arith.addf %98, %99 : vector<1x128xf32>
    %101 = arith.addf %100, %96 : vector<1x128xf32>
    %cst_42 = arith.constant 0.000000e+00 : f32
    %102 = vector.broadcast %cst_42 : f32 to vector<1x128xf32>
    %103 = arith.maximumf %101, %102 : vector<1x128xf32>
    %104 = arith.mulf %97, %103 : vector<1x128xf32>
    %105 = arith.addf %93, %104 : vector<1x128xf32>
    %c0_43 = arith.constant 0 : index
    %c0_44 = arith.constant 0 : index
    %106 = vector.load %arg3[%c0_43, %c0_44] : memref<1x128xf32, #tpu.memory_space<vmem>>, vector<1x128xf32>
    tpu.vector_store %arg3[%c0_43, %c0_44], %105 {strides = array<i32>} : memref<1x128xf32, #tpu.memory_space<vmem>>, vector<1x128xf32>,
    return
  }
  func.func @transform_0(%arg0: i32) -> (i32, i32) {
    %c0_i32 = arith.constant 0 : i32
    %c0_i32_0 = arith.constant 0 : i32
    return %arg0, %c0_i32 : i32, i32
  }
  func.func @transform_1(%arg0: i32) -> (i32, i32) {
    %c0_i32 = arith.constant 0 : i32
    %c0_i32_0 = arith.constant 0 : i32
    %c0_i32_1 = arith.constant 0 : i32
    return %c0_i32, %c0_i32_0 : i32, i32
  }
  func.func @transform_2(%arg0: i32) -> (i32, i32) {
    %c0_i32 = arith.constant 0 : i32
    %c0_i32_0 = arith.constant 0 : i32
    return %arg0, %c0_i32 : i32, i32
  }
}

</mosaic_0001>

<llo_original>
// kernel: simple_network.1
$region0: #{simple_network.1}
  #allocation0 [shape = 'u32[]', space=smem, size = 0x4, offset = 0x4, fixed_abs, tag = 'smem constant byte address 0x4 - core index']
  #allocation1 [shape = 'u32[144,128]{1,0:T(1,128)}', space=vmem, size = 0x12000, scoped, tag = 'internal scratch']
  %s0 = inlined_call_operand.vmem [shape: f32[1,128], index: 0, kind: input, shape index: {}]
  %s1 = inlined_call_operand.vmem [shape: f32[40,128], index: 1, kind: input, shape index: {}]
  %s2 = inlined_call_operand.vmem [shape: f32[1,128], index: 2, kind: output, shape index: {}]
  %s3 = sld [smem:[#allocation0]]
  $region18: #{simple_network.1} parent=0
    _
  %s5 = ssub.s32 1, %s3
  %s6 = scalar_select 0, %s5, %s3
  // Predicated region
  $region2: #{simple_network.1} parent=0 // pred_check
    _
  $region3: #{simple_network.1} parent=0 // pred_check_branch
    %8 = sbr.rel (0) target = $region5
  $region4: #{simple_network.1} parent=0 // pred_region
    _
  $region5: #{simple_network.1} parent=0 // pred_fallthru
    _
  // Predicated region
  $region6: #{simple_network.1} parent=0 // pred_check
    _
  $region7: #{simple_network.1} parent=0 // pred_check_branch
    %10 = sbr.rel (0) target = $region9
  $region8: #{simple_network.1} parent=0 // pred_region
    _
  $region9: #{simple_network.1} parent=0 // pred_fallthru
    _
  %v11 = vld [vmem:[%s0] sm:$0x1]
  %v12 = vlaneseq
  %v13 = vand.u32 %v12, 127
  %v14 = vand.u32 %v13, 1
  %vm15 = vcmp.eq.s32.totalorder %v14, 0
  %16 = vrot.lane.b32.xlu0 %v11, 127
  %v17 = vpop.permute.xlu0 %16
  %18 = vrot.lane.b32.xlu0 %v11, 1
  %v19 = vpop.permute.xlu0 %18
  %v20 = vsel %vm15, %v17, %v19
  %v21 = vld [vmem:[%s1 + $0x18] sm:$0x1]
  %v22 = vld [vmem:[%s1] sm:$0x1]
  %v23 = vld [vmem:[%s1 + $0x8] sm:$0x1]
  %v24 = vld [vmem:[%s1 + $0x19] sm:$0x1]
  %v25 = vld [vmem:[%s1 + $0x10] sm:$0x1]
  %v26 = vmul.f32 %v22, %v11
  %v27 = vmul.f32 %v23, %v20
  %v28 = vadd.f32 %v26, %v27
  %v29 = vadd.f32 %v28, %v24
  %v30 = vmax.f32 %v29, 0.0
  %v31 = vmul.f32 %v25, %v30
  %v32 = vadd.f32 %v21, %v31
  %v33 = vld [vmem:[%s1 + $0x1] sm:$0x1]
  %v34 = vld [vmem:[%s1 + $0x9] sm:$0x1]
  %v35 = vld [vmem:[%s1 + $0x1a] sm:$0x1]
  %v36 = vld [vmem:[%s1 + $0x11] sm:$0x1]
  %v37 = vmul.f32 %v33, %v11
  %v38 = vmul.f32 %v34, %v20
  %v39 = vadd.f32 %v37, %v38
  %v40 = vadd.f32 %v39, %v35
  %v41 = vmax.f32 %v40, 0.0
  %v42 = vmul.f32 %v36, %v41
  %v43 = vadd.f32 %v32, %v42
  %v44 = vld [vmem:[%s1 + $0x2] sm:$0x1]
  %v45 = vld [vmem:[%s1 + $0xa] sm:$0x1]
  %v46 = vld [vmem:[%s1 + $0x1b] sm:$0x1]
  %v47 = vld [vmem:[%s1 + $0x12] sm:$0x1]
  %v48 = vmul.f32 %v44, %v11
  %v49 = vmul.f32 %v45, %v20
  %v50 = vadd.f32 %v48, %v49
  %v51 = vadd.f32 %v50, %v46
  %v52 = vmax.f32 %v51, 0.0
  %v53 = vmul.f32 %v47, %v52
  %v54 = vadd.f32 %v43, %v53
  %v55 = vld [vmem:[%s1 + $0x3] sm:$0x1]
  %v56 = vld [vmem:[%s1 + $0xb] sm:$0x1]
  %v57 = vld [vmem:[%s1 + $0x1c] sm:$0x1]
  %v58 = vld [vmem:[%s1 + $0x13] sm:$0x1]
  %v59 = vmul.f32 %v55, %v11
  %v60 = vmul.f32 %v56, %v20
  %v61 = vadd.f32 %v59, %v60
  %v62 = vadd.f32 %v61, %v57
  %v63 = vmax.f32 %v62, 0.0
  %v64 = vmul.f32 %v58, %v63
  %v65 = vadd.f32 %v54, %v64
  %v66 = vld [vmem:[%s1 + $0x4] sm:$0x1]
  %v67 = vld [vmem:[%s1 + $0xc] sm:$0x1]
  %v68 = vld [vmem:[%s1 + $0x1d] sm:$0x1]
  %v69 = vld [vmem:[%s1 + $0x14] sm:$0x1]
  %v70 = vmul.f32 %v66, %v11
  %v71 = vmul.f32 %v67, %v20
  %v72 = vadd.f32 %v70, %v71
  %v73 = vadd.f32 %v72, %v68
  %v74 = vmax.f32 %v73, 0.0
  %v75 = vmul.f32 %v69, %v74
  %v76 = vadd.f32 %v65, %v75
  %v77 = vld [vmem:[%s1 + $0x5] sm:$0x1]
  %v78 = vld [vmem:[%s1 + $0xd] sm:$0x1]
  %v79 = vld [vmem:[%s1 + $0x1e] sm:$0x1]
  %v80 = vld [vmem:[%s1 + $0x15] sm:$0x1]
  %v81 = vmul.f32 %v77, %v11
  %v82 = vmul.f32 %v78, %v20
  %v83 = vadd.f32 %v81, %v82
  %v84 = vadd.f32 %v83, %v79
  %v85 = vmax.f32 %v84, 0.0
  %v86 = vmul.f32 %v80, %v85
  %v87 = vadd.f32 %v76, %v86
  %v88 = vld [vmem:[%s1 + $0x6] sm:$0x1]
  %v89 = vld [vmem:[%s1 + $0xe] sm:$0x1]
  %v90 = vld [vmem:[%s1 + $0x1f] sm:$0x1]
  %v91 = vld [vmem:[%s1 + $0x16] sm:$0x1]
  %v92 = vmul.f32 %v88, %v11
  %v93 = vmul.f32 %v89, %v20
  %v94 = vadd.f32 %v92, %v93
  %v95 = vadd.f32 %v94, %v90
  %v96 = vmax.f32 %v95, 0.0
  %v97 = vmul.f32 %v91, %v96
  %v98 = vadd.f32 %v87, %v97
  %v99 = vld [vmem:[%s1 + $0x7] sm:$0x1]
  %v100 = vld [vmem:[%s1 + $0xf] sm:$0x1]
  %v101 = vld [vmem:[%s1 + $0x20] sm:$0x1]
  %v102 = vld [vmem:[%s1 + $0x17] sm:$0x1]
  %v103 = vmul.f32 %v99, %v11
  %v104 = vmul.f32 %v100, %v20
  %v105 = vadd.f32 %v103, %v104
  %v106 = vadd.f32 %v105, %v101
  %v107 = vmax.f32 %v106, 0.0
  %v108 = vmul.f32 %v102, %v107
  %v109 = vadd.f32 %v98, %v108
  %110 = vst [vmem:[%s2] sm:$0x1] %v109
  // Predicated region
  $region10: #{simple_network.1} parent=0 // pred_check
    _
  $region11: #{simple_network.1} parent=0 // pred_check_branch
    %112 = sbr.rel (0) target = $region13
  $region12: #{simple_network.1} parent=0 // pred_region
    _
  $region13: #{simple_network.1} parent=0 // pred_fallthru
    _
  // Predicated region
  $region14: #{simple_network.1} parent=0 // pred_check
    _
  $region15: #{simple_network.1} parent=0 // pred_check_branch
    %114 = sbr.rel (0) target = $region17
  $region16: #{simple_network.1} parent=0 // pred_region
    _
  $region17: #{simple_network.1} parent=0 // pred_fallthru
    _

</llo_original>
